<compile_context>
chip_gen: v5e
topology: v5e:2x2
jax: 0.10.0
libtpu: 0.0.40
codegen_flags: <defaults>
</compile_context>

<pallas_src>
import functools

import numpy as np
import jax
import jax.numpy as jnp
from jax import lax
from jax.experimental import pallas as pl
from jax.experimental.pallas import tpu as pltpu

EPS = float(np.finfo(np.float32).eps)   # same eps the PyTorch module uses
CLAMP_MAX = 88.722835                   # DynamicPooling's exp clamp


# ----------------------------------------------------------------------------
# Fused Probe kernel (single invocation, no grid).
# Layout: channels on sublanes, (batch, H, W) flattened on lanes (B*H*W lanes).
# ----------------------------------------------------------------------------
def _probe_kernel(x_ref, wc_ref, kw_ref, ws_ref, bs_ref, pvm_ref,
                  pv_out_ref, *sum_out_refs, W, HW, K, emit_summary):
    Ltot = x_ref.shape[1]                     # B*H*W (multiple of 128)
    pad = K // 2

    # ---- self.conv: 1x1 conv inplanes -> num_offsets (bf16 MXU matmul).
    # The conv bias is folded in: x carries a trailing ones row, wc a bias column.
    y = jnp.dot(wc_ref[...], x_ref[...], preferred_element_type=jnp.float32)   # (NO, Ltot)

    # ---- self.dpool (DynamicPooling): depthwise gaussian conv of exp(clamp(y)), then log.
    ex = jnp.exp(jnp.minimum(y, CLAMP_MAX))

    # Lane coordinates (computed once): in-image row / col of every lane.
    lane = lax.broadcasted_iota(jnp.int32, (1, Ltot), 1)
    img = lane % HW
    row = img // W
    col = img % W

    kw = kw_ref[...]                          # (NO, K*K) normalized gaussian taps
    acc = jnp.zeros_like(ex)
    t = 0
    for dy in range(-pad, pad + 1):
        for dx in range(-pad, pad + 1):
            if dy == 0 and dx == 0:
                acc = acc + ex * kw[:, t:t + 1]
            else:
                off = dy * W + dx
                shift = (-off) % Ltot
                shifted = pltpu.roll(ex, shift=shift, axis=1)
                # Roll the lane index the same way: it tells us, per output lane,
                # the true in-image displacement of the data that landed there,
                # which masks out row/col/batch wrap-around without any padding.
                src = pltpu.roll(lane, shift=shift, axis=1)
                simg = src % HW
                dr = simg // W - row
                dc = simg % W - col
                # The gaussian taps are symmetric (kw[dy,dx] == kw[-dy,-dx]), so
                # the same weight is correct for either rotation direction.
                valid = ((dr == dy) & (dc == dx)) | ((dr == -dy) & (dc == -dx))
                acc = acc + jnp.where(valid, shifted, 0.0) * kw[:, t:t + 1]
            t += 1
    pooled = jnp.log(acc + EPS)               # (NO, Ltot)

    # ---- self.displace: x.repeat over probes -> DisplaceChannel ----
    # TODO(synk): DisplaceChannel is an external CUDA op; with
    # hparams.MODEL.DETAIL.DISABLE_DISPLACE=True it is the identity, so every
    # probe group is an identical copy of `pooled`.

    # ---- self.summarizer: 1x1 conv num_offsets -> 1, done on the MXU ----
    summary = jnp.dot(ws_ref[...], pooled, preferred_element_type=jnp.float32) + bs_ref[0]

    # ---- probe softmax + expectation (use_softmax=True), closed form ----
    # All P probe logits are identical copies of `summary`, so the softmax is
    # uniform and probe_val == mean(probe_vals) at every pixel.
    pv_out_ref[...] = jnp.broadcast_to(pvm_ref[0], pv_out_ref.shape).astype(pv_out_ref.dtype)
    if emit_summary:
        sum_out_refs[0][...] = summary        # pre-softmax map (verification path)


# ----------------------------------------------------------------------------
# Parameter-only glue: DynamicPooling's normalized gaussian kernel.
# ----------------------------------------------------------------------------
def _dpool_taps(sigma, kernel_size):
    half = kernel_size // 2
    r = jnp.arange(-half, half + 1, dtype=jnp.float32)
    dissq = r[:, None] ** 2 + r[None, :] ** 2                       # (k, k)
    kern = jnp.exp(-(dissq / 2.0)[None, :, :] / (sigma[:, None, None] ** 2 + EPS))
    kern = kern / jnp.sum(kern, axis=(1, 2), keepdims=True)         # (C, k, k)
    return kern


# ----------------------------------------------------------------------------
# Wrapper (NCHW in / NCHW out, like the PyTorch module).
# ----------------------------------------------------------------------------
def probe_forward(x_nchw, params, *, dpool_size=3, return_summary=False):
    B, Cin, H, W = x_nchw.shape
    NO = params["w_conv"].shape[0]
    K = dpool_size
    HW = H * W
    Ltot = B * HW
    if Ltot % 128 != 0:
        raise ValueError("batch * H * W must be a multiple of 128 for the lane-dense layout")

    # probe_type='scale' runtime offsets; they only feed DisplaceChannel, which
    # is the identity under DISABLE_DISPLACE=True, so they are dead here.
    _ = (params["offsets"][None, :, :] * params["probe_vals"][:, None, None]).reshape(-1, 2)

    taps = _dpool_taps(params["sigma"], K).reshape(NO, K * K)
    # Conv weight with bias folded in as a trailing column; bf16 MXU operands.
    wc_aug = jnp.concatenate(
        [params["w_conv"].reshape(NO, Cin), params["b_conv"].reshape(NO, 1)],
        axis=1).astype(jnp.bfloat16)
    ws = params["w_sum"].reshape(1, NO).astype(jnp.float32)
    bs = params["b_sum"].reshape(1).astype(jnp.float32)
    pv_mean = jnp.mean(params["probe_vals"]).reshape(1).astype(jnp.float32)

    # channels on sublanes, (batch, spatial) flattened on lanes; ones row folds the bias.
    x_flat = x_nchw.transpose(1, 0, 2, 3).reshape(Cin, Ltot)
    x_aug = jnp.concatenate([x_flat, jnp.ones((1, Ltot), x_flat.dtype)],
                            axis=0).astype(jnp.bfloat16)

    kernel = functools.partial(_probe_kernel, W=W, HW=HW, K=K,
                               emit_summary=return_summary)
    vmem = pl.BlockSpec(memory_space=pltpu.MemorySpace.VMEM)
    smem = pl.BlockSpec(memory_space=pltpu.MemorySpace.SMEM)

    flat_shape = jax.ShapeDtypeStruct((1, Ltot), jnp.float32)
    if return_summary:
        out_shape, out_specs = (flat_shape, flat_shape), (vmem, vmem)
    else:
        out_shape, out_specs = flat_shape, vmem

    outs = pl.pallas_call(
        kernel,
        out_shape=out_shape,
        in_specs=[vmem, vmem, vmem, vmem, smem, smem],
        out_specs=out_specs,
    )(x_aug, wc_aug, taps, ws, bs, pv_mean)

    if return_summary:
        pv_flat, sum_flat = outs
        return pv_flat.reshape(B, 1, H, W), sum_flat.reshape(B, 1, H, W)
    return outs.reshape(B, 1, H, W)


# ----------------------------------------------------------------------------
# Deterministic parameter init + plain-JAX reference for verification.
# ----------------------------------------------------------------------------
def init_params(key, *, inplanes=16, num_offsets=16, num_probes=5,
                probe_min=0.5, probe_max=1.5, dpool_size=3):
    ks = jax.random.split(key, 5)
    n = lambda k, s, sc=0.1: jax.random.normal(k, s, jnp.float32) * sc
    size = int(np.sqrt(num_offsets))
    assert size * size == num_offsets
    pos = jnp.linspace(-0.2, 0.2, size)
    gx, gy = jnp.meshgrid(pos, pos, indexing="ij")
    offsets = jnp.stack([gx.reshape(-1), gy.reshape(-1)], axis=1)    # init_as_grid=True
    return {
        "w_conv": n(ks[0], (num_offsets, inplanes, 1, 1)),           # PyTorch Conv2d weight
        "b_conv": n(ks[1], (num_offsets,)),
        # module init: sigma = kernel_size/2/2; perturbed so per-channel kernels differ
        "sigma": dpool_size / 2.0 / 2.0
                 + 0.05 * jax.random.normal(ks[2], (num_offsets,), jnp.float32),
        "w_sum": n(ks[3], (1, num_offsets, 1, 1)),                   # summarizer Conv2d weight
        "b_sum": n(ks[4], (1,)),
        "offsets": offsets,
        "probe_vals": jnp.linspace(probe_min, probe_max, num_probes).astype(jnp.float32),
    }


def reference_forward(x_nchw, params, *, dpool_size=3):
    B, Cin, H, W = x_nchw.shape
    NO = params["w_conv"].shape[0]
    P = params["probe_vals"].shape[0]
    half = dpool_size // 2
    wc = params["w_conv"].reshape(NO, Cin)
    y = jnp.einsum("bchw,oc->bohw", x_nchw, wc) + params["b_conv"][None, :, None, None]
    kern = _dpool_taps(params["sigma"], dpool_size).reshape(NO, 1, dpool_size, dpool_size)
    expx = jnp.exp(jnp.minimum(y, CLAMP_MAX))
    gp = lax.conv_general_dilated(
        expx, kern, window_strides=(1, 1), padding=((half, half), (half, half)),
        dimension_numbers=("NCHW", "OIHW", "NCHW"), feature_group_count=NO)
    pooled = jnp.log(gp + EPS)
    dis = jnp.tile(pooled, (1, P, 1, 1)).reshape(B * P, NO, H, W)    # identity displace
    ws = params["w_sum"].reshape(1, NO)
    out = jnp.einsum("bchw,oc->bohw", dis, ws) + params["b_sum"][None, :, None, None]
    out = out.reshape(B, P, H, W)
    score = jax.nn.softmax(out, axis=1)
    pv = params["probe_vals"]
    probe_val = jnp.sum(score * pv[None, :, None, None], axis=1, keepdims=True)
    return probe_val, out[:, :1]


if __name__ == "__main__":
    key = jax.random.PRNGKey(0)
    kp, kx = jax.random.split(key)
    B, Cin, H, W = 2, 16, 16, 16
    params = init_params(kp, inplanes=Cin, num_offsets=16, num_probes=5,
                         probe_min=0.5, probe_max=1.5, dpool_size=3)
    x = jax.random.normal(kx, (B, Cin, H, W), jnp.float32)           # NCHW, like PyTorch

    fwd_prod = jax.jit(lambda xx, pp: probe_forward(xx, pp, dpool_size=3))
    fwd_dbg = jax.jit(lambda xx, pp: probe_forward(xx, pp, dpool_size=3, return_summary=True))

    # Production path: module output only (probe_val).
    out = jax.block_until_ready(fwd_prod(x, params))
    assert out.shape == (B, 1, H, W), out.shape

    # Verification path: also emit the pre-softmax summary map, which exercises
    # the conv / DynamicPooling / summarizer math inside the fused kernel.
    out_dbg, summary = jax.block_until_ready(fwd_dbg(x, params))

    ref_out, ref_summary = reference_forward(x, params, dpool_size=3)
    # Tolerances leave headroom for the bf16 MXU operands of the 1x1 conv
    # (reference is pure f32); the depthwise pooling / summarizer are f32.
    np.testing.assert_allclose(np.asarray(summary), np.asarray(ref_summary),
                               rtol=5e-3, atol=5e-3)
    np.testing.assert_allclose(np.asarray(out_dbg), np.asarray(ref_out),
                               rtol=5e-3, atol=5e-3)
    np.testing.assert_allclose(np.asarray(out), np.asarray(ref_out),
                               rtol=5e-3, atol=5e-3)
    print("KERNEL_OK")
</pallas_src>

<mosaic_0001>
module attributes {stable_mosaic.version = 11 : i64} {
  func.func @_probe_kernel(%arg0: memref<17x512xbf16, #tpu.memory_space<vmem>>, %arg1: memref<16x17xbf16, #tpu.memory_space<vmem>>, %arg2: memref<16x9xf32, #tpu.memory_space<vmem>>, %arg3: memref<1x16xf32, #tpu.memory_space<vmem>>, %arg4: memref<1xf32, #tpu.memory_space<smem>>, %arg5: memref<1xf32, #tpu.memory_space<smem>>, %arg6: memref<1x512xf32, #tpu.memory_space<vmem>>) attributes {dimension_semantics = [], scalar_prefetch = 0 : i64, scratch_operands = 0 : i64, tpu.core_type = #tpu.core_type<tc>} {
    %c0 = arith.constant 0 : index
    %0 = memref.load %arg5[%c0] : memref<1xf32, #tpu.memory_space<smem>>
    %1 = vector.broadcast %0 : f32 to vector<1x512xf32>
    %c0_0 = arith.constant 0 : index
    %c0_1 = arith.constant 0 : index
    %2 = vector.load %arg6[%c0_0, %c0_1] : memref<1x512xf32, #tpu.memory_space<vmem>>, vector<1x512xf32>
    tpu.vector_store %arg6[%c0_0, %c0_1], %1 {strides = array<i32>} : memref<1x512xf32, #tpu.memory_space<vmem>>, vector<1x512xf32>,
    return
  }
}

</mosaic_0001>

<llo_original>
// kernel: _lambda_.1
$region0: #{_lambda_.1}
  #allocation0 [shape = 'u32[]', space=smem, size = 0x4, offset = 0x4, fixed_abs, tag = 'smem constant byte address 0x4 - core index']
  #allocation1 [shape = 'u32[72,128]{1,0:T(1,128)}', space=vmem, size = 0x9000, scoped, tag = 'internal scratch']
  #allocation2 [shape = 'f32[1]{0:T(128)S(6)}', space=smem, size = 0x200, scoped, tag = 'scoped memory for _lambda_.1']
  #allocation3 [shape = 'f32[1]{0:T(128)S(6)}', space=smem, size = 0x200, scoped, tag = 'scoped memory for _lambda_.1']
  %s0 = inlined_call_operand.vmem [shape: bf16[17,512], index: 0, kind: input, shape index: {}]
  %s1 = inlined_call_operand.vmem [shape: bf16[16,17], index: 1, kind: input, shape index: {}]
  %s2 = inlined_call_operand.vmem [shape: f32[16,9], index: 2, kind: input, shape index: {}]
  %s3 = inlined_call_operand.vmem [shape: f32[1,16], index: 3, kind: input, shape index: {}]
  %s4 = inlined_call_operand.<no memory space> [shape: f32[1], index: 4, kind: input, shape index: {}]
  %s5 = inlined_call_operand.<no memory space> [shape: f32[1], index: 5, kind: input, shape index: {}]
  %s6 = inlined_call_operand.vmem [shape: f32[1,512], index: 6, kind: output, shape index: {}]
  %s7 = sld [smem:[#allocation0]]
  $region34: #{_lambda_.1} parent=0
    _
  %s9 = ssub.s32 1, %s7
  %s10 = scalar_select 0, %s9, %s7
  %11 = sst [smem:[#allocation2]] %s4
  %12 = sst [smem:[#allocation3]] %s5
  // Predicated region
  $region2: #{_lambda_.1} parent=0 // pred_check
    _
  $region3: #{_lambda_.1} parent=0 // pred_check_branch
    %14 = sbr.rel (0) target = $region5
  $region4: #{_lambda_.1} parent=0 // pred_region
    _
  $region5: #{_lambda_.1} parent=0 // pred_fallthru
    _
  // Predicated region
  $region6: #{_lambda_.1} parent=0 // pred_check
    _
  $region7: #{_lambda_.1} parent=0 // pred_check_branch
    %16 = sbr.rel (0) target = $region9
  $region8: #{_lambda_.1} parent=0 // pred_region
    _
  $region9: #{_lambda_.1} parent=0 // pred_fallthru
    _
  // Predicated region
  $region10: #{_lambda_.1} parent=0 // pred_check
    _
  $region11: #{_lambda_.1} parent=0 // pred_check_branch
    %18 = sbr.rel (0) target = $region13
  $region12: #{_lambda_.1} parent=0 // pred_region
    _
  $region13: #{_lambda_.1} parent=0 // pred_fallthru
    _
  // Predicated region
  $region14: #{_lambda_.1} parent=0 // pred_check
    _
  $region15: #{_lambda_.1} parent=0 // pred_check_branch
    %20 = sbr.rel (0) target = $region17
  $region16: #{_lambda_.1} parent=0 // pred_region
    _
  $region17: #{_lambda_.1} parent=0 // pred_fallthru
    _
  // Predicated region
  $region18: #{_lambda_.1} parent=0 // pred_check
    _
  $region19: #{_lambda_.1} parent=0 // pred_check_branch
    %22 = sbr.rel (0) target = $region21
  $region20: #{_lambda_.1} parent=0 // pred_region
    _
  $region21: #{_lambda_.1} parent=0 // pred_fallthru
    _
  // Predicated region
  $region22: #{_lambda_.1} parent=0 // pred_check
    _
  $region23: #{_lambda_.1} parent=0 // pred_check_branch
    %24 = sbr.rel (0) target = $region25
  $region24: #{_lambda_.1} parent=0 // pred_region
    _
  $region25: #{_lambda_.1} parent=0 // pred_fallthru
    _
  %s25 = sld [smem:[#allocation3]]
  %v26 = vstv %s25
  %v27 = vlaneseq
  %vm28 = vcmp.ge.s32.totalorder %v27, 0
  %vm29 = vcmp.lt.s32.totalorder %v27, 512
  %vm30 = vmand %vm28, %vm29
  %31 = vst.msk [vmem:[%s6] sm:$0xf] %vm30, %v26
  // Predicated region
  $region26: #{_lambda_.1} parent=0 // pred_check
    _
  $region27: #{_lambda_.1} parent=0 // pred_check_branch
    %33 = sbr.rel (0) target = $region29
  $region28: #{_lambda_.1} parent=0 // pred_region
    _
  $region29: #{_lambda_.1} parent=0 // pred_fallthru
    _
  // Predicated region
  $region30: #{_lambda_.1} parent=0 // pred_check
    _
  $region31: #{_lambda_.1} parent=0 // pred_check_branch
    %35 = sbr.rel (0) target = $region33
  $region32: #{_lambda_.1} parent=0 // pred_region
    _
  $region33: #{_lambda_.1} parent=0 // pred_fallthru
    _

</llo_original>
